<compile_context>
chip_gen: v6e
topology: v6e:2x2x1
jax: 0.10.0
libtpu: 0.0.40
codegen_flags: <defaults>
</compile_context>

<pallas_src>
import functools

import jax
import jax.numpy as jnp
from jax.experimental import pallas as pl
from jax.experimental.pallas import tpu as pltpu

HIDDEN = 512


def _round_up(x: int, m: int) -> int:
    return ((x + m - 1) // m) * m


def sac_actor_kernel(x_ref, w1_ref, b1_ref, w2_ref, b2_ref, w3_ref, b3_ref,
                     o_ref):
    """One batch tile of the 3-layer MLP + tanh head.

    x_ref: (TB, obs_dim) f32 tile of observations (cast to bf16 in-kernel).
    w*_ref: bf16 weights (in, out), resident in VMEM across grid steps.
    b*_ref: (1, out) f32 biases.
    o_ref: (TB, act_dim) f32 output tile (clamped tanh means).
    """
    # In-kernel cast: free VPU work hidden under the MXU, avoids a separate
    # XLA cast pass over obses in HBM.
    x = x_ref[...].astype(jnp.bfloat16)

    # Layer 1: Linear(obs_dim, 512) + ReLU (f32 accumulation on the MXU).
    h1 = jnp.dot(x, w1_ref[...], preferred_element_type=jnp.float32)
    h1 = jnp.maximum(h1 + b1_ref[...], 0.0).astype(jnp.bfloat16)

    # Layer 2: Linear(512, 512) + ReLU.
    h2 = jnp.dot(h1, w2_ref[...], preferred_element_type=jnp.float32)
    h2 = jnp.maximum(h2 + b2_ref[...], 0.0).astype(jnp.bfloat16)

    # Layer 3 (means half only): Linear(512, act_dim).
    means = jnp.dot(h2, w3_ref[...], preferred_element_type=jnp.float32)
    means = means + b3_ref[...]

    o_ref[...] = jnp.clip(jnp.tanh(means), -0.999, 0.999).astype(o_ref.dtype)


@functools.partial(jax.jit, static_argnames=("tb",))
def sac_actor_forward(obses, params, *, tb: int = 1024):
    """Forward pass: tanh(means) clamped to [-0.999, 0.999].

    obses: (batch, obs_dim) f32 observations (or a single (obs_dim,) obs).
    params: (w1, b1, w2, b2, w3, b3) with w* bf16 (in, out), b* f32 (1, out).
            w3/b3 hold the full 2*act_dim output; the means half is sliced
            here on the host (free layout plumbing, halves the L3 matmul).
    """
    w1, b1, w2, b2, w3, b3 = params

    if obses.ndim == 1:  # single observation -> add batch dim (_resize_obses)
        obses = obses[None, :]
    batch = obses.shape[0]
    obses = obses.reshape(batch, -1)  # flatten obs features; keep f32 in HBM
    obs_dim = obses.shape[1]
    hidden = w1.shape[1]
    act_dim = w3.shape[1] // 2

    # Host-side slice to the "means" half of layer 3 (matches chunk(2, -1)[0]).
    w3m = w3[:, :act_dim]
    b3m = b3[:, :act_dim]

    # Batch tiling.  Aim for >= 2 grid steps when the batch allows so the
    # "parallel" batch axis can be sharded across both v7x TensorCores; round
    # tiles to 16 sublanes (bf16 packs 16 rows per vreg).  A batch smaller
    # than 16 uses a single full-extent block (always layout-legal).  The grid
    # is a ceiling divide — Pallas masks the ragged last block, so no host
    # padding or output slicing is needed.
    if batch < 16:
        tb_eff = batch
    else:
        tb_eff = max(16, min(tb, _round_up(pl.cdiv(batch, 2), 16)))
    grid = pl.cdiv(batch, tb_eff)

    # Advisory cost estimate for XLA's scheduler.
    flops = 2 * batch * (obs_dim * hidden + hidden * hidden + hidden * act_dim)
    bytes_accessed = (
        batch * obs_dim * 4                                   # obses (f32)
        + batch * act_dim * 4                                 # output (f32)
        + (obs_dim * hidden + hidden * hidden + hidden * act_dim) * 2  # bf16 W
        + (2 * hidden + act_dim) * 4                          # f32 biases
    )
    cost = pl.CostEstimate(flops=flops,
                           transcendentals=batch * act_dim,
                           bytes_accessed=bytes_accessed)

    const = lambda i: (0, 0)  # weights/biases: same block every step -> VMEM resident
    out = pl.pallas_call(
        sac_actor_kernel,
        out_shape=jax.ShapeDtypeStruct((batch, act_dim), jnp.float32),
        grid_spec=pltpu.PrefetchScalarGridSpec(
            num_scalar_prefetch=0,
            grid=(grid,),
            in_specs=[
                pl.BlockSpec((tb_eff, obs_dim), lambda i: (i, 0)),  # obses tile
                pl.BlockSpec((obs_dim, hidden), const),             # w1
                pl.BlockSpec((1, hidden), const),                   # b1
                pl.BlockSpec((hidden, hidden), const),               # w2
                pl.BlockSpec((1, hidden), const),                   # b2
                pl.BlockSpec((hidden, act_dim), const),              # w3 (means half)
                pl.BlockSpec((1, act_dim), const),                   # b3 (means half)
            ],
            out_specs=pl.BlockSpec((tb_eff, act_dim), lambda i: (i, 0)),
        ),
        compiler_params=pltpu.CompilerParams(
            dimension_semantics=("parallel",),   # shard batch tiles across TCs
            vmem_limit_bytes=64 * 1024 * 1024,   # headroom for TB=1024 tiles
        ),
        cost_estimate=cost,
    )(obses, w1, b1, w2, b2, w3m, b3m)

    return out


def init_params(key, obs_dim, act_dim, hidden=HIDDEN):
    """Orthogonal weights, zero biases (mirrors initialize_module_orthogonal).

    Weights are stored (in, out) in bf16; biases (1, out) in f32.
    """
    ortho = jax.nn.initializers.orthogonal()
    k1, k2, k3 = jax.random.split(key, 3)
    w1 = ortho(k1, (obs_dim, hidden), jnp.float32).astype(jnp.bfloat16)
    w2 = ortho(k2, (hidden, hidden), jnp.float32).astype(jnp.bfloat16)
    w3 = ortho(k3, (hidden, 2 * act_dim), jnp.float32).astype(jnp.bfloat16)
    b1 = jnp.zeros((1, hidden), jnp.float32)
    b2 = jnp.zeros((1, hidden), jnp.float32)
    b3 = jnp.zeros((1, 2 * act_dim), jnp.float32)
    return (w1, b1, w2, b2, w3, b3)


def reference_forward(obses, params):
    """Pure-JAX reference mirroring the kernel precision (bf16 in, f32 acc)."""
    w1, b1, w2, b2, w3, b3 = params
    act_dim = w3.shape[1] // 2
    x = obses.reshape(obses.shape[0], -1).astype(jnp.bfloat16)
    h1 = jnp.maximum(
        jnp.dot(x, w1, preferred_element_type=jnp.float32) + b1, 0.0
    ).astype(jnp.bfloat16)
    h2 = jnp.maximum(
        jnp.dot(h1, w2, preferred_element_type=jnp.float32) + b2, 0.0
    ).astype(jnp.bfloat16)
    out = jnp.dot(h2, w3, preferred_element_type=jnp.float32) + b3
    means = out[:, :act_dim]
    return jnp.clip(jnp.tanh(means), -0.999, 0.999)


# TODO(synk): SACActor.sample (reparametrized gaussian + log-prob) is not part
# of forward() and is left to the host-side JAX wrapper.

if __name__ == "__main__":
    # Small shapes consistent with the module: flat observations, flat actions.
    batch, obs_dim, act_dim = 2, 32, 8

    key = jax.random.PRNGKey(0)
    k_obs, k_params = jax.random.split(key)
    obses = jax.random.normal(k_obs, (batch, obs_dim), dtype=jnp.float32)
    params = init_params(k_params, obs_dim, act_dim)

    actions = sac_actor_forward(obses, params)
    actions = jax.block_until_ready(actions)

    expected = reference_forward(obses, params)
    assert actions.shape == (batch, act_dim)
    assert jnp.allclose(actions, expected, atol=2e-3, rtol=2e-3)
    assert bool(jnp.all(jnp.abs(actions) <= 0.999))

    print("KERNEL_OK")
</pallas_src>

<mosaic_0001>
module attributes {stable_mosaic.version = 11 : i64} {
  func.func @sac_actor_kernel(%arg0: i32, %arg1: memref<2x32xf32, #tpu.memory_space<vmem>>, %arg2: memref<32x512xbf16, #tpu.memory_space<vmem>>, %arg3: memref<1x512xf32, #tpu.memory_space<vmem>>, %arg4: memref<512x512xbf16, #tpu.memory_space<vmem>>, %arg5: memref<1x512xf32, #tpu.memory_space<vmem>>, %arg6: memref<512x8xbf16, #tpu.memory_space<vmem>>, %arg7: memref<1x8xf32, #tpu.memory_space<vmem>>, %arg8: memref<2x8xf32, #tpu.memory_space<vmem>>) attributes {dimension_semantics = [#tpu.dimension_semantics<parallel>], iteration_bounds = array<i64: 1>, scalar_prefetch = 0 : i64, scratch_operands = 0 : i64, tpu.core_type = #tpu.core_type<tc>, window_params = [{transform_indices = @transform_0, window_bounds = array<i64: 2, 32>}, {pipeline_mode = #tpu.pipeline_mode<synchronous>, transform_indices = @transform_1, window_bounds = array<i64: 32, 512>}, {pipeline_mode = #tpu.pipeline_mode<synchronous>, transform_indices = @transform_2, window_bounds = array<i64: 1, 512>}, {pipeline_mode = #tpu.pipeline_mode<synchronous>, transform_indices = @transform_3, window_bounds = array<i64: 512, 512>}, {pipeline_mode = #tpu.pipeline_mode<synchronous>, transform_indices = @transform_4, window_bounds = array<i64: 1, 512>}, {pipeline_mode = #tpu.pipeline_mode<synchronous>, transform_indices = @transform_5, window_bounds = array<i64: 512, 8>}, {pipeline_mode = #tpu.pipeline_mode<synchronous>, transform_indices = @transform_6, window_bounds = array<i64: 1, 8>}, {transform_indices = @transform_7, window_bounds = array<i64: 2, 8>}]} {
    %c0 = arith.constant 0 : index
    %c0_0 = arith.constant 0 : index
    %0 = vector.load %arg1[%c0, %c0_0] : memref<2x32xf32, #tpu.memory_space<vmem>>, vector<2x32xf32>
    %1 = arith.truncf %0 : vector<2x32xf32> to vector<2x32xbf16>
    %c0_1 = arith.constant 0 : index
    %c0_2 = arith.constant 0 : index
    %2 = vector.load %arg2[%c0_1, %c0_2] : memref<32x512xbf16, #tpu.memory_space<vmem>>, vector<32x512xbf16>
    %cst = arith.constant dense<0.000000e+00> : vector<2x512xf32>
    %3 = tpu.matmul %1, %2, %cst {dimension_numbers = #tpu.dot_dimension_numbers<[1], [0], [0], [1], [0, 0, 1, 1], [], []>} : vector<2x32xbf16>, vector<32x512xbf16>, vector<2x512xf32> -> vector<2x512xf32>
    %c0_3 = arith.constant 0 : index
    %c0_4 = arith.constant 0 : index
    %4 = vector.load %arg3[%c0_3, %c0_4] : memref<1x512xf32, #tpu.memory_space<vmem>>, vector<1x512xf32>
    %5 = vector.broadcast %4 : vector<1x512xf32> to vector<2x512xf32>
    %6 = arith.addf %3, %5 : vector<2x512xf32>
    %cst_5 = arith.constant 0.000000e+00 : f32
    %7 = vector.broadcast %cst_5 : f32 to vector<2x512xf32>
    %8 = arith.maximumf %6, %7 : vector<2x512xf32>
    %9 = arith.truncf %8 : vector<2x512xf32> to vector<2x512xbf16>
    %c0_6 = arith.constant 0 : index
    %c0_7 = arith.constant 0 : index
    %10 = vector.load %arg4[%c0_6, %c0_7] : memref<512x512xbf16, #tpu.memory_space<vmem>>, vector<512x512xbf16>
    %cst_8 = arith.constant dense<0.000000e+00> : vector<2x512xf32>
    %11 = tpu.matmul %9, %10, %cst_8 {dimension_numbers = #tpu.dot_dimension_numbers<[1], [0], [0], [1], [0, 0, 1, 1], [], []>} : vector<2x512xbf16>, vector<512x512xbf16>, vector<2x512xf32> -> vector<2x512xf32>
    %c0_9 = arith.constant 0 : index
    %c0_10 = arith.constant 0 : index
    %12 = vector.load %arg5[%c0_9, %c0_10] : memref<1x512xf32, #tpu.memory_space<vmem>>, vector<1x512xf32>
    %13 = vector.broadcast %12 : vector<1x512xf32> to vector<2x512xf32>
    %14 = arith.addf %11, %13 : vector<2x512xf32>
    %cst_11 = arith.constant 0.000000e+00 : f32
    %15 = vector.broadcast %cst_11 : f32 to vector<2x512xf32>
    %16 = arith.maximumf %14, %15 : vector<2x512xf32>
    %17 = arith.truncf %16 : vector<2x512xf32> to vector<2x512xbf16>
    %c0_12 = arith.constant 0 : index
    %c0_13 = arith.constant 0 : index
    %18 = vector.load %arg6[%c0_12, %c0_13] : memref<512x8xbf16, #tpu.memory_space<vmem>>, vector<512x8xbf16>
    %cst_14 = arith.constant dense<0.000000e+00> : vector<2x8xf32>
    %19 = tpu.matmul %17, %18, %cst_14 {dimension_numbers = #tpu.dot_dimension_numbers<[1], [0], [0], [1], [0, 0, 1, 1], [], []>} : vector<2x512xbf16>, vector<512x8xbf16>, vector<2x8xf32> -> vector<2x8xf32>
    %c0_15 = arith.constant 0 : index
    %c0_16 = arith.constant 0 : index
    %20 = vector.load %arg7[%c0_15, %c0_16] : memref<1x8xf32, #tpu.memory_space<vmem>>, vector<1x8xf32>
    %21 = vector.broadcast %20 : vector<1x8xf32> to vector<2x8xf32>
    %22 = arith.addf %19, %21 : vector<2x8xf32>
    %23 = math.tanh %22 : vector<2x8xf32>
    %cst_17 = arith.constant -9.990000e-01 : f32
    %cst_18 = arith.constant 9.990000e-01 : f32
    %24 = vector.broadcast %cst_17 : f32 to vector<2x8xf32>
    %25 = arith.maximumf %24, %23 : vector<2x8xf32>
    %26 = vector.broadcast %cst_18 : f32 to vector<2x8xf32>
    %27 = arith.minimumf %26, %25 : vector<2x8xf32>
    %c0_19 = arith.constant 0 : index
    %c0_20 = arith.constant 0 : index
    %28 = vector.load %arg8[%c0_19, %c0_20] : memref<2x8xf32, #tpu.memory_space<vmem>>, vector<2x8xf32>
    tpu.vector_store %arg8[%c0_19, %c0_20], %27 {strides = array<i32>} : memref<2x8xf32, #tpu.memory_space<vmem>>, vector<2x8xf32>,
    return
  }
  func.func @transform_0(%arg0: i32) -> (i32, i32) {
    %c0_i32 = arith.constant 0 : i32
    %c0_i32_0 = arith.constant 0 : i32
    return %arg0, %c0_i32 : i32, i32
  }
  func.func @transform_1(%arg0: i32) -> (i32, i32) {
    %c0_i32 = arith.constant 0 : i32
    %c0_i32_0 = arith.constant 0 : i32
    %c0_i32_1 = arith.constant 0 : i32
    return %c0_i32, %c0_i32_0 : i32, i32
  }
  func.func @transform_2(%arg0: i32) -> (i32, i32) {
    %c0_i32 = arith.constant 0 : i32
    %c0_i32_0 = arith.constant 0 : i32
    %c0_i32_1 = arith.constant 0 : i32
    return %c0_i32, %c0_i32_0 : i32, i32
  }
  func.func @transform_3(%arg0: i32) -> (i32, i32) {
    %c0_i32 = arith.constant 0 : i32
    %c0_i32_0 = arith.constant 0 : i32
    %c0_i32_1 = arith.constant 0 : i32
    return %c0_i32, %c0_i32_0 : i32, i32
  }
  func.func @transform_4(%arg0: i32) -> (i32, i32) {
    %c0_i32 = arith.constant 0 : i32
    %c0_i32_0 = arith.constant 0 : i32
    %c0_i32_1 = arith.constant 0 : i32
    return %c0_i32, %c0_i32_0 : i32, i32
  }
  func.func @transform_5(%arg0: i32) -> (i32, i32) {
    %c0_i32 = arith.constant 0 : i32
    %c0_i32_0 = arith.constant 0 : i32
    %c0_i32_1 = arith.constant 0 : i32
    return %c0_i32, %c0_i32_0 : i32, i32
  }
  func.func @transform_6(%arg0: i32) -> (i32, i32) {
    %c0_i32 = arith.constant 0 : i32
    %c0_i32_0 = arith.constant 0 : i32
    %c0_i32_1 = arith.constant 0 : i32
    return %c0_i32, %c0_i32_0 : i32, i32
  }
  func.func @transform_7(%arg0: i32) -> (i32, i32) {
    %c0_i32 = arith.constant 0 : i32
    %c0_i32_0 = arith.constant 0 : i32
    return %arg0, %c0_i32 : i32, i32
  }
}

</mosaic_0001>

<llo_original>
// kernel: sac_actor_forward.1
$region0: #{sac_actor_forward.1}
  #allocation0 [shape = 'u32[]', space=smem, size = 0x4, offset = 0x4, fixed_abs, tag = 'smem constant byte address 0x4 - core index']
  #allocation1 [shape = 'u32[144,128]{1,0:T(1,128)}', space=vmem, size = 0x12000, scoped, tag = 'internal scratch']
  %s0 = inlined_call_operand.vmem [shape: f32[2,32], index: 0, kind: input, shape index: {}]
  %s1 = inlined_call_operand.vmem [shape: bf16[32,512], index: 1, kind: input, shape index: {}]
  %s2 = inlined_call_operand.vmem [shape: f32[1,512], index: 2, kind: input, shape index: {}]
  %s3 = inlined_call_operand.hbm [shape: bf16[512,512], index: 3, kind: input, shape index: {}]
  %s4 = inlined_call_operand.vmem [shape: f32[1,512], index: 4, kind: input, shape index: {}]
  %s5 = inlined_call_operand.vmem [shape: bf16[512,8], index: 5, kind: input, shape index: {}]
  %s6 = inlined_call_operand.vmem [shape: f32[1,8], index: 6, kind: input, shape index: {}]
  %s7 = inlined_call_operand.hbm [shape: f32[2,8], index: 7, kind: output, shape index: {}]
  %s8 = sld [smem:[#allocation0]]
  $region42: #{sac_actor_forward.1} parent=0
    _
  %s10 = ssub.s32 1, %s8
  %s11 = scalar_select 0, %s10, %s8
  $region1: #{sac_actor_forward.1} parent=0
    #allocation2 [shape = 'u8[524288]{0}', space=vmem, size = 0x80000, scoped, tag = 'input window, operand 3, single buffered']
    #allocation3 [shape = 's32[1]{0}', space=sflag, size = 0x4, scoped, tag = 'scoped memory for sac_actor_forward.1']
    #allocation4 [shape = 's32[1]{0}', space=sflag, size = 0x4, scoped, tag = 'scoped memory for sac_actor_forward.1']
    #allocation5 [shape = 'u8[1024]{0}', space=vmem, size = 0x400, scoped, tag = 'output window, operand 0, single buffered']
    %12 = vsyncpa [#allocation3], 0
    %13 = vsyncpa [#allocation4], 0
    // Predicated region
    $region2: #{sac_actor_forward.1} parent=1 // pred_check
      _
    $region3: #{sac_actor_forward.1} parent=1 // pred_check_branch
      %15 = sbr.rel (0) target = $region5
    $region4: #{sac_actor_forward.1} parent=1 // pred_region
      _
    $region5: #{sac_actor_forward.1} parent=1 // pred_fallthru
      _
    // Predicated region
    $region6: #{sac_actor_forward.1} parent=1 // pred_check
      _
    $region7: #{sac_actor_forward.1} parent=1 // pred_check_branch
      %17 = sbr.rel (0) target = $region9
    $region8: #{sac_actor_forward.1} parent=1 // pred_region
      _
    $region9: #{sac_actor_forward.1} parent=1 // pred_fallthru
      _
    // Predicated region
    $region10: #{sac_actor_forward.1} parent=1 // pred_check
      _
    $region11: #{sac_actor_forward.1} parent=1 // pred_check_branch
      %19 = sbr.rel (0) target = $region13
    $region12: #{sac_actor_forward.1} parent=1 // pred_region
      _
    $region13: #{sac_actor_forward.1} parent=1 // pred_fallthru
      _
    // Predicated region
    $region14: #{sac_actor_forward.1} parent=1 // pred_check
      _
    $region15: #{sac_actor_forward.1} parent=1 // pred_check_branch
      %21 = sbr.rel (0) target = $region17
    $region16: #{sac_actor_forward.1} parent=1 // pred_region
      %s23 = ssub.s32 16384, 16384
      %24 = vsyncadd [#allocation3], %s23
      %s25 = sshll.u32 [#allocation2], 4
      %s26 = int_to_ptr.vmem [resolvable:$true] %s25
      %31 = dma.hbm_to_vmem [thread:$0]  %s3, 16384, %s26, [#allocation3], 256, 256, 16
    $region17: #{sac_actor_forward.1} parent=1 // pred_fallthru
      _
    // Predicated region
    $region18: #{sac_actor_forward.1} parent=1 // pred_check
      _
    $region19: #{sac_actor_forward.1} parent=1 // pred_check_branch
      %33 = sbr.rel (0) target = $region21
    $region20: #{sac_actor_forward.1} parent=1 // pred_region
      _
    $region21: #{sac_actor_forward.1} parent=1 // pred_fallthru
      _
    // Predicated region
    $region22: #{sac_actor_forward.1} parent=1 // pred_check
      _
    $region23: #{sac_actor_forward.1} parent=1 // pred_check_branch
      %35 = sbr.rel (0) target = $region25
    $region24: #{sac_actor_forward.1} parent=1 // pred_region
      _
    $region25: #{sac_actor_forward.1} parent=1 // pred_fallthru
      _
    // Predicated region
    $region26: #{sac_actor_forward.1} parent=1 // pred_check
      _
    $region27: #{sac_actor_forward.1} parent=1 // pred_check_branch
      %37 = sbr.rel (0) target = $region29
    $region28: #{sac_actor_forward.1} parent=1 // pred_region
      _
    $region29: #{sac_actor_forward.1} parent=1 // pred_fallthru
      _
    // Predicated region
    $region30: #{sac_actor_forward.1} parent=1 // pred_check
      _
    $region31: #{sac_actor_forward.1} parent=1 // pred_check_branch
      %39 = sbr.rel (0) target = $region33
    $region32: #{sac_actor_forward.1} parent=1 // pred_region
      %40 = dma.done [#allocation3], 16384
    $region33: #{sac_actor_forward.1} parent=1 // pred_fallthru
      _
    %v42 = vld [vmem:[%s0] sm:$0x3]
    %v43 = vpack.c.bf16 %v42, %v42
    %v44 = vld [vmem:[%s1] sm:$0xff]
    %v45 = vld [vmem:[%s1 + $0x8] sm:$0xff]
    %v46 = vld [vmem:[%s1 + $0x10] sm:$0xff]
    %v47 = vld [vmem:[%s1 + $0x18] sm:$0xff]
    %v48 = vld [vmem:[%s1 + $0x20] sm:$0xff]
    %v49 = vld [vmem:[%s1 + $0x28] sm:$0xff]
    %v50 = vld [vmem:[%s1 + $0x30] sm:$0xff]
    %v51 = vld [vmem:[%s1 + $0x38] sm:$0xff]
    %v52 = vld [vmem:[%s2] sm:$0xf]
    %v54 = vlaneseq
    %v55 = vshrl.u32 %v54, 7
    %v56 = vsub.s32 0, %v55
    %v57 = vrot.slane %v52, %v56
    %v58 = vlaneseq
    %v59 = vshrl.u32 %v58, 7
    %v60 = vsub.s32 1, %v59
    %v61 = vrot.slane %v52, %v60
    %v62 = vlaneseq
    %v63 = vshrl.u32 %v62, 7
    %v64 = vsub.s32 2, %v63
    %v65 = vrot.slane %v52, %v64
    %v66 = vlaneseq
    %v67 = vshrl.u32 %v66, 7
    %v68 = vsub.s32 3, %v67
    %v69 = vrot.slane %v52, %v68
    %v82 = vunpack.c.l.b16 %v44
    %v83 = vunpack.c.h.b16 %v44
    %v84 = vunpack.c.l.b16 %v45
    %v85 = vunpack.c.h.b16 %v45
    %v86 = vunpack.c.l.b16 %v46
    %v87 = vunpack.c.h.b16 %v46
    %v88 = vunpack.c.l.b16 %v47
    %v89 = vunpack.c.h.b16 %v47
    %v90 = vunpack.c.l.b16 %v48
    %v91 = vunpack.c.h.b16 %v48
    %v92 = vunpack.c.l.b16 %v49
    %v93 = vunpack.c.h.b16 %v49
    %v94 = vunpack.c.l.b16 %v50
    %v95 = vunpack.c.h.b16 %v50
    %v96 = vunpack.c.l.b16 %v51
    %v97 = vunpack.c.h.b16 %v51
    %v98 = vpack.c.b16 %v86, %v82
    %v99 = vpack.c.b16 %v87, %v83
    %v100 = vpack.c.b16 %v88, %v84
    %v101 = vpack.c.b16 %v89, %v85
    %v102 = vpack.c.b16 %v94, %v90
    %v103 = vpack.c.b16 %v95, %v91
    %v104 = vpack.c.b16 %v96, %v92
    %v105 = vpack.c.b16 %v97, %v93
    %vm114 = vcmask 261120
    %v116 = vsel %vm114, %v43, 0
    %118 = vmatprep.subr.bf16.mxu0 0
    %119 = vmatpush1.bf16.msra.mxu0 0
    %120 = vmatprep.subr.bf16.mxu0 0
    %121 = vmatpush1.bf16.msra.mxu0 0
    %122 = vmatprep.subr.bf16.mxu0 0
    %123 = vmatpush1.bf16.msra.mxu0 0
    %124 = vmatprep.subr.bf16.mxu0 0
    %125 = vmatpush1.bf16.msra.mxu0 0
    %126 = vmatprep.subr.bf16.mxu0 0
    %127 = vmatpush1.bf16.msra.mxu0 0
    %128 = vmatprep.subr.bf16.mxu0 0
    %129 = vmatpush1.bf16.msra.mxu0 0
    %130 = vmatprep.subr.bf16.mxu0 %v103
    %131 = vmatpush1.bf16.msra.mxu0 %v102
    %132 = vmatprep.subr.bf16.mxu0 %v99
    %133 = vmatpush1.bf16.msra.mxu0 %v98
    %134 = vmatprep.subr.bf16.mxu0 0
    %135 = vmatpush2.bf16.msra.mxu0 0
    %136 = vmatprep.subr.bf16.mxu0 0
    %137 = vmatpush2.bf16.msra.mxu0 0
    %138 = vmatprep.subr.bf16.mxu0 0
    %139 = vmatpush2.bf16.msra.mxu0 0
    %140 = vmatprep.subr.bf16.mxu0 0
    %141 = vmatpush2.bf16.msra.mxu0 0
    %142 = vmatprep.subr.bf16.mxu0 0
    %143 = vmatpush2.bf16.msra.mxu0 0
    %144 = vmatprep.subr.bf16.mxu0 0
    %145 = vmatpush2.bf16.msra.mxu0 0
    %146 = vmatprep.subr.bf16.mxu0 0
    %147 = vmatpush2.bf16.msra.mxu0 0
    %148 = vmatprep.subr.bf16.mxu0 0
    %149 = vmatpush2.bf16.msra.mxu0 0
    %150 = vmatprep.mubr.bf16.mxu0 0
    %151 = vmatmul.mubr.bf16.gmra.mxu0 %v116
    %v152 = vpop.f32.mrf.mxu0
    %v153 = vadd.f32 %v57, %v152
    %v154 = vpop.f32.mrf.mxu0
    %v155 = vadd.f32 %v61, %v154
    %v156 = vpop.f32.mrf.mxu0
    %v157 = vpop.f32.mrf.mxu0
    %158 = vdwg.mxu0
    %159 = vmatprep.subr.bf16.mxu0 0
    %160 = vmatpush1.bf16.msra.mxu0 0
    %161 = vmatprep.subr.bf16.mxu0 0
    %162 = vmatpush1.bf16.msra.mxu0 0
    %163 = vmatprep.subr.bf16.mxu0 0
    %164 = vmatpush1.bf16.msra.mxu0 0
    %165 = vmatprep.subr.bf16.mxu0 0
    %166 = vmatpush1.bf16.msra.mxu0 0
    %167 = vmatprep.subr.bf16.mxu0 0
    %168 = vmatpush1.bf16.msra.mxu0 0
    %169 = vmatprep.subr.bf16.mxu0 0
    %170 = vmatpush1.bf16.msra.mxu0 0
    %171 = vmatprep.subr.bf16.mxu0 %v105
    %172 = vmatpush1.bf16.msra.mxu0 %v104
    %173 = vmatprep.subr.bf16.mxu0 %v101
    %174 = vmatpush1.bf16.msra.mxu0 %v100
    %175 = vmatprep.subr.bf16.mxu0 0
    %176 = vmatpush2.bf16.msra.mxu0 0
    %177 = vmatprep.subr.bf16.mxu0 0
    %178 = vmatpush2.bf16.msra.mxu0 0
    %179 = vmatprep.subr.bf16.mxu0 0
    %180 = vmatpush2.bf16.msra.mxu0 0
    %181 = vmatprep.subr.bf16.mxu0 0
    %182 = vmatpush2.bf16.msra.mxu0 0
    %183 = vmatprep.subr.bf16.mxu0 0
    %184 = vmatpush2.bf16.msra.mxu0 0
    %185 = vmatprep.subr.bf16.mxu0 0
    %186 = vmatpush2.bf16.msra.mxu0 0
    %187 = vmatprep.subr.bf16.mxu0 0
    %188 = vmatpush2.bf16.msra.mxu0 0
    %189 = vmatprep.subr.bf16.mxu0 0
    %190 = vmatpush2.bf16.msra.mxu0 0
    %191 = vmatprep.mubr.bf16.mxu0 0
    %192 = vmatmul.mubr.bf16.gmra.mxu0 %v116
    %v193 = vpop.f32.mrf.mxu0
    %v194 = vadd.f32 %v65, %v193
    %v195 = vpop.f32.mrf.mxu0
    %v196 = vadd.f32 %v69, %v195
    %v197 = vpop.f32.mrf.mxu0
    %v198 = vpop.f32.mrf.mxu0
    %199 = vdwg.mxu0
    %v200 = vmax.f32 %v153, 0.0
    %v201 = vmax.f32 %v155, 0.0
    %v202 = vmax.f32 %v194, 0.0
    %v203 = vmax.f32 %v196, 0.0
    %v204 = vpack.c.bf16 %v200, %v200
    %v205 = vpack.c.bf16 %v201, %v201
    %v206 = vpack.c.bf16 %v202, %v202
    %v207 = vpack.c.bf16 %v203, %v203
    %v208 = vld [vmem:[#allocation2] sm:$0xff]
    %v209 = vld [vmem:[#allocation2 + $0x8] sm:$0xff]
    %v210 = vld [vmem:[#allocation2 + $0x10] sm:$0xff]
    %v211 = vld [vmem:[#allocation2 + $0x18] sm:$0xff]
    %v212 = vld [vmem:[#allocation2 + $0x20] sm:$0xff]
    %v213 = vld [vmem:[#allocation2 + $0x28] sm:$0xff]
    %v214 = vld [vmem:[#allocation2 + $0x30] sm:$0xff]
    %v215 = vld [vmem:[#allocation2 + $0x38] sm:$0xff]
    %v216 = vld [vmem:[#allocation2 + $0x40] sm:$0xff]
    %v217 = vld [vmem:[#allocation2 + $0x48] sm:$0xff]
    %v218 = vld [vmem:[#allocation2 + $0x50] sm:$0xff]
    %v219 = vld [vmem:[#allocation2 + $0x58] sm:$0xff]
    %v220 = vld [vmem:[#allocation2 + $0x60] sm:$0xff]
    %v221 = vld [vmem:[#allocation2 + $0x68] sm:$0xff]
    %v222 = vld [vmem:[#allocation2 + $0x70] sm:$0xff]
    %v223 = vld [vmem:[#allocation2 + $0x78] sm:$0xff]
    %v224 = vld [vmem:[#allocation2 + $0x80] sm:$0xff]
    %v225 = vld [vmem:[#allocation2 + $0x88] sm:$0xff]
    %v226 = vld [vmem:[#allocation2 + $0x90] sm:$0xff]
    %v227 = vld [vmem:[#allocation2 + $0x98] sm:$0xff]
    %v228 = vld [vmem:[#allocation2 + $0xa0] sm:$0xff]
    %v229 = vld [vmem:[#allocation2 + $0xa8] sm:$0xff]
    %v230 = vld [vmem:[#allocation2 + $0xb0] sm:$0xff]
    %v231 = vld [vmem:[#allocation2 + $0xb8] sm:$0xff]
    %v232 = vld [vmem:[#allocation2 + $0xc0] sm:$0xff]
    %v233 = vld [vmem:[#allocation2 + $0xc8] sm:$0xff]
    %v234 = vld [vmem:[#allocation2 + $0xd0] sm:$0xff]
    %v235 = vld [vmem:[#allocation2 + $0xd8] sm:$0xff]
    %v236 = vld [vmem:[#allocation2 + $0xe0] sm:$0xff]
    %v237 = vld [vmem:[#allocation2 + $0xe8] sm:$0xff]
    %v238 = vld [vmem:[#allocation2 + $0xf0] sm:$0xff]
    %v239 = vld [vmem:[#allocation2 + $0xf8] sm:$0xff]
    %v240 = vld [vmem:[#allocation2 + $0x100] sm:$0xff]
    %v241 = vld [vmem:[#allocation2 + $0x108] sm:$0xff]
    %v242 = vld [vmem:[#allocation2 + $0x110] sm:$0xff]
    %v243 = vld [vmem:[#allocation2 + $0x118] sm:$0xff]
    %v244 = vld [vmem:[#allocation2 + $0x120] sm:$0xff]
    %v245 = vld [vmem:[#allocation2 + $0x128] sm:$0xff]
    %v246 = vld [vmem:[#allocation2 + $0x130] sm:$0xff]
    %v247 = vld [vmem:[#allocation2 + $0x138] sm:$0xff]
    %v248 = vld [vmem:[#allocation2 + $0x140] sm:$0xff]
    %v249 = vld [vmem:[#allocation2 + $0x148] sm:$0xff]
    %v250 = vld [vmem:[#allocation2 + $0x150] sm:$0xff]
    %v251 = vld [vmem:[#allocation2 + $0x158] sm:$0xff]
    %v252 = vld [vmem:[#allocation2 + $0x160] sm:$0xff]
    %v253 = vld [vmem:[#allocation2 + $0x168] sm:$0xff]
    %v254 = vld [vmem:[#allocation2 + $0x170] sm:$0xff]
    %v255 = vld [vmem:[#allocation2 + $0x178] sm:$0xff]
    %v256 = vld [vmem:[#allocation2 + $0x180] sm:$0xff]
    %v257 = vld [vmem:[#allocation2 + $0x188] sm:$0xff]
    %v258 = vld [vmem:[#allocation2 + $0x190] sm:$0xff]
    %v259 = vld [vmem:[#allocation2 + $0x198] sm:$0xff]
    %v260 = vld [vmem:[#allocation2 + $0x1a0] sm:$0xff]
    %v261 = vld [vmem:[#allocation2 + $0x1a8] sm:$0xff]
    %v262 = vld [vmem:[#allocation2 + $0x1b0] sm:$0xff]
    %v263 = vld [vmem:[#allocation2 + $0x1b8] sm:$0xff]
    %v264 = vld [vmem:[#allocation2 + $0x1c0] sm:$0xff]
    %v265 = vld [vmem:[#allocation2 + $0x1c8] sm:$0xff]
    %v266 = vld [vmem:[#allocation2 + $0x1d0] sm:$0xff]
    %v267 = vld [vmem:[#allocation2 + $0x1d8] sm:$0xff]
    %v268 = vld [vmem:[#allocation2 + $0x1e0] sm:$0xff]
    %v269 = vld [vmem:[#allocation2 + $0x1e8] sm:$0xff]
    %v270 = vld [vmem:[#allocation2 + $0x1f0] sm:$0xff]
    %v271 = vld [vmem:[#allocation2 + $0x1f8] sm:$0xff]
    %v272 = vld [vmem:[#allocation2 + $0x200] sm:$0xff]
    %v273 = vld [vmem:[#allocation2 + $0x208] sm:$0xff]
    %v274 = vld [vmem:[#allocation2 + $0x210] sm:$0xff]
    %v275 = vld [vmem:[#allocation2 + $0x218] sm:$0xff]
    %v276 = vld [vmem:[#allocation2 + $0x220] sm:$0xff]
    %v277 = vld [vmem:[#allocation2 + $0x228] sm:$0xff]
    %v278 = vld [vmem:[#allocation2 + $0x230] sm:$0xff]
    %v279 = vld [vmem:[#allocation2 + $0x238] sm:$0xff]
    %v280 = vld [vmem:[#allocation2 + $0x240] sm:$0xff]
    %v281 = vld [vmem:[#allocation2 + $0x248] sm:$0xff]
    %v282 = vld [vmem:[#allocation2 + $0x250] sm:$0xff]
    %v283 = vld [vmem:[#allocation2 + $0x258] sm:$0xff]
    %v284 = vld [vmem:[#allocation2 + $0x260] sm:$0xff]
    %v285 = vld [vmem:[#allocation2 + $0x268] sm:$0xff]
    %v286 = vld [vmem:[#allocation2 + $0x270] sm:$0xff]
    %v287 = vld [vmem:[#allocation2 + $0x278] sm:$0xff]
    %v288 = vld [vmem:[#allocation2 + $0x280] sm:$0xff]
    %v289 = vld [vmem:[#allocation2 + $0x288] sm:$0xff]
    %v290 = vld [vmem:[#allocation2 + $0x290] sm:$0xff]
    %v291 = vld [vmem:[#allocation2 + $0x298] sm:$0xff]
    %v292 = vld [vmem:[#allocation2 + $0x2a0] sm:$0xff]
    %v293 = vld [vmem:[#allocation2 + $0x2a8] sm:$0xff]
    %v294 = vld [vmem:[#allocation2 + $0x2b0] sm:$0xff]
    %v295 = vld [vmem:[#allocation2 + $0x2b8] sm:$0xff]
    %v296 = vld [vmem:[#allocation2 + $0x2c0] sm:$0xff]
    %v297 = vld [vmem:[#allocation2 + $0x2c8] sm:$0xff]
    %v298 = vld [vmem:[#allocation2 + $0x2d0] sm:$0xff]
    %v299 = vld [vmem:[#allocation2 + $0x2d8] sm:$0xff]
    %v300 = vld [vmem:[#allocation2 + $0x2e0] sm:$0xff]
    %v301 = vld [vmem:[#allocation2 + $0x2e8] sm:$0xff]
    %v302 = vld [vmem:[#allocation2 + $0x2f0] sm:$0xff]
    %v303 = vld [vmem:[#allocation2 + $0x2f8] sm:$0xff]
    %v304 = vld [vmem:[#allocation2 + $0x300] sm:$0xff]
    %v305 = vld [vmem:[#allocation2 + $0x308] sm:$0xff]
    %v306 = vld [vmem:[#allocation2 + $0x310] sm:$0xff]
    %v307 = vld [vmem:[#allocation2 + $0x318] sm:$0xff]
    %v308 = vld [vmem:[#allocation2 + $0x320] sm:$0xff]
    %v309 = vld [vmem:[#allocation2 + $0x328] sm:$0xff]
    %v310 = vld [vmem:[#allocation2 + $0x330] sm:$0xff]
    %v311 = vld [vmem:[#allocation2 + $0x338] sm:$0xff]
    %v312 = vld [vmem:[#allocation2 + $0x340] sm:$0xff]
    %v313 = vld [vmem:[#allocation2 + $0x348] sm:$0xff]
    %v314 = vld [vmem:[#allocation2 + $0x350] sm:$0xff]
    %v315 = vld [vmem:[#allocation2 + $0x358] sm:$0xff]
    %v316 = vld [vmem:[#allocation2 + $0x360] sm:$0xff]
    %v317 = vld [vmem:[#allocation2 + $0x368] sm:$0xff]
    %v318 = vld [vmem:[#allocation2 + $0x370] sm:$0xff]
    %v319 = vld [vmem:[#allocation2 + $0x378] sm:$0xff]
    %v320 = vld [vmem:[#allocation2 + $0x380] sm:$0xff]
    %v321 = vld [vmem:[#allocation2 + $0x388] sm:$0xff]
    %v322 = vld [vmem:[#allocation2 + $0x390] sm:$0xff]
    %v323 = vld [vmem:[#allocation2 + $0x398] sm:$0xff]
    %v324 = vld [vmem:[#allocation2 + $0x3a0] sm:$0xff]
    %v325 = vld [vmem:[#allocation2 + $0x3a8] sm:$0xff]
    %v326 = vld [vmem:[#allocation2 + $0x3b0] sm:$0xff]
    %v327 = vld [vmem:[#allocation2 + $0x3b8] sm:$0xff]
    %v328 = vld [vmem:[#allocation2 + $0x3c0] sm:$0xff]
    %v329 = vld [vmem:[#allocation2 + $0x3c8] sm:$0xff]
    %v330 = vld [vmem:[#allocation2 + $0x3d0] sm:$0xff]
    %v331 = vld [vmem:[#allocation2 + $0x3d8] sm:$0xff]
    %v332 = vld [vmem:[#allocation2 + $0x3e0] sm:$0xff]
    %v333 = vld [vmem:[#allocation2 + $0x3e8] sm:$0xff]
    %v334 = vld [vmem:[#allocation2 + $0x3f0] sm:$0xff]
    %v335 = vld [vmem:[#allocation2 + $0x3f8] sm:$0xff]
    %v336 = vld [vmem:[%s4] sm:$0xf]
    %v338 = vlaneseq
    %v339 = vshrl.u32 %v338, 7
    %v340 = vsub.s32 0, %v339
    %v341 = vrot.slane %v336, %v340
    %v342 = vlaneseq
    %v343 = vshrl.u32 %v342, 7
    %v344 = vsub.s32 1, %v343
    %v345 = vrot.slane %v336, %v344
    %v346 = vlaneseq
    %v347 = vshrl.u32 %v346, 7
    %v348 = vsub.s32 2, %v347
    %v349 = vrot.slane %v336, %v348
    %v350 = vlaneseq
    %v351 = vshrl.u32 %v350, 7
    %v352 = vsub.s32 3, %v351
    %v353 = vrot.slane %v336, %v352
    %v486 = vunpack.c.l.b16 %v208
    %v487 = vunpack.c.h.b16 %v208
    %v488 = vunpack.c.l.b16 %v209
    %v489 = vunpack.c.h.b16 %v209
    %v490 = vunpack.c.l.b16 %v210
    %v491 = vunpack.c.h.b16 %v210
    %v492 = vunpack.c.l.b16 %v211
    %v493 = vunpack.c.h.b16 %v211
    %v494 = vunpack.c.l.b16 %v212
    %v495 = vunpack.c.h.b16 %v212
    %v496 = vunpack.c.l.b16 %v213
    %v497 = vunpack.c.h.b16 %v213
    %v498 = vunpack.c.l.b16 %v214
    %v499 = vunpack.c.h.b16 %v214
    %v500 = vunpack.c.l.b16 %v215
    %v501 = vunpack.c.h.b16 %v215
    %v502 = vunpack.c.l.b16 %v216
    %v503 = vunpack.c.h.b16 %v216
    %v504 = vunpack.c.l.b16 %v217
    %v505 = vunpack.c.h.b16 %v217
    %v506 = vunpack.c.l.b16 %v218
    %v507 = vunpack.c.h.b16 %v218
    %v508 = vunpack.c.l.b16 %v219
    %v509 = vunpack.c.h.b16 %v219
    %v510 = vunpack.c.l.b16 %v220
    %v511 = vunpack.c.h.b16 %v220
    %v512 = vunpack.c.l.b16 %v221
    %v513 = vunpack.c.h.b16 %v221
    %v514 = vunpack.c.l.b16 %v222
    %v515 = vunpack.c.h.b16 %v222
    %v516 = vunpack.c.l.b16 %v223
    %v517 = vunpack.c.h.b16 %v223
    %v518 = vunpack.c.l.b16 %v224
    %v519 = vunpack.c.h.b16 %v224
    %v520 = vunpack.c.l.b16 %v225
    %v521 = vunpack.c.h.b16 %v225
    %v522 = vunpack.c.l.b16 %v226
    %v523 = vunpack.c.h.b16 %v226
    %v524 = vunpack.c.l.b16 %v227
    %v525 = vunpack.c.h.b16 %v227
    %v526 = vunpack.c.l.b16 %v228
    %v527 = vunpack.c.h.b16 %v228
    %v528 = vunpack.c.l.b16 %v229
    %v529 = vunpack.c.h.b16 %v229
    %v530 = vunpack.c.l.b16 %v230
    %v531 = vunpack.c.h.b16 %v230
    %v532 = vunpack.c.l.b16 %v231
    %v533 = vunpack.c.h.b16 %v231
    %v534 = vunpack.c.l.b16 %v232
    %v535 = vunpack.c.h.b16 %v232
    %v536 = vunpack.c.l.b16 %v233
    %v537 = vunpack.c.h.b16 %v233
    %v538 = vunpack.c.l.b16 %v234
    %v539 = vunpack.c.h.b16 %v234
    %v540 = vunpack.c.l.b16 %v235
    %v541 = vunpack.c.h.b16 %v235
    %v542 = vunpack.c.l.b16 %v236
    %v543 = vunpack.c.h.b16 %v236
    %v544 = vunpack.c.l.b16 %v237
    %v545 = vunpack.c.h.b16 %v237
    %v546 = vunpack.c.l.b16 %v238
    %v547 = vunpack.c.h.b16 %v238
    %v548 = vunpack.c.l.b16 %v239
    %v549 = vunpack.c.h.b16 %v239
    %v550 = vunpack.c.l.b16 %v240
    %v551 = vunpack.c.h.b16 %v240
    %v552 = vunpack.c.l.b16 %v241
    %v553 = vunpack.c.h.b16 %v241
    %v554 = vunpack.c.l.b16 %v242
    %v555 = vunpack.c.h.b16 %v242
    %v556 = vunpack.c.l.b16 %v243
    %v557 = vunpack.c.h.b16 %v243
    %v558 = vunpack.c.l.b16 %v244
    %v559 = vunpack.c.h.b16 %v244
    %v560 = vunpack.c.l.b16 %v245
    %v561 = vunpack.c.h.b16 %v245
    %v562 = vunpack.c.l.b16 %v246
    %v563 = vunpack.c.h.b16 %v246
    %v564 = vunpack.c.l.b16 %v247
    %v565 = vunpack.c.h.b16 %v247
    %v566 = vunpack.c.l.b16 %v248
    %v567 = vunpack.c.h.b16 %v248
    %v568 = vunpack.c.l.b16 %v249
    %v569 = vunpack.c.h.b16 %v249
    %v570 = vunpack.c.l.b16 %v250
    %v571 = vunpack.c.h.b16 %v250
    %v572 = vunpack.c.l.b16 %v251
    %v573 = vunpack.c.h.b16 %v251
    %v574 = vunpack.c.l.b16 %v252
    %v575 = vunpack.c.h.b16 %v252
    %v576 = vunpack.c.l.b16 %v253
    %v577 = vunpack.c.h.b16 %v253
    %v578 = vunpack.c.l.b16 %v254
    %v579 = vunpack.c.h.b16 %v254
    %v580 = vunpack.c.l.b16 %v255
    %v581 = vunpack.c.h.b16 %v255
    %v582 = vunpack.c.l.b16 %v256
    %v583 = vunpack.c.h.b16 %v256
    %v584 = vunpack.c.l.b16 %v257
    %v585 = vunpack.c.h.b16 %v257
    %v586 = vunpack.c.l.b16 %v258
    %v587 = vunpack.c.h.b16 %v258
    %v588 = vunpack.c.l.b16 %v259
    %v589 = vunpack.c.h.b16 %v259
    %v590 = vunpack.c.l.b16 %v260
    %v591 = vunpack.c.h.b16 %v260
    %v592 = vunpack.c.l.b16 %v261
    %v593 = vunpack.c.h.b16 %v261
    %v594 = vunpack.c.l.b16 %v262
    %v595 = vunpack.c.h.b16 %v262
    %v596 = vunpack.c.l.b16 %v263
    %v597 = vunpack.c.h.b16 %v263
    %v598 = vunpack.c.l.b16 %v264
    %v599 = vunpack.c.h.b16 %v264
    %v600 = vunpack.c.l.b16 %v265
    %v601 = vunpack.c.h.b16 %v265
    %v602 = vunpack.c.l.b16 %v266
    %v603 = vunpack.c.h.b16 %v266
    %v604 = vunpack.c.l.b16 %v267
    %v605 = vunpack.c.h.b16 %v267
    %v606 = vunpack.c.l.b16 %v268
    %v607 = vunpack.c.h.b16 %v268
    %v608 = vunpack.c.l.b16 %v269
    %v609 = vunpack.c.h.b16 %v269
    %v610 = vunpack.c.l.b16 %v270
    %v611 = vunpack.c.h.b16 %v270
    %v612 = vunpack.c.l.b16 %v271
    %v613 = vunpack.c.h.b16 %v271
    %v614 = vunpack.c.l.b16 %v272
    %v615 = vunpack.c.h.b16 %v272
    %v616 = vunpack.c.l.b16 %v273
    %v617 = vunpack.c.h.b16 %v273
    %v618 = vunpack.c.l.b16 %v274
    %v619 = vunpack.c.h.b16 %v274
    %v620 = vunpack.c.l.b16 %v275
    %v621 = vunpack.c.h.b16 %v275
    %v622 = vunpack.c.l.b16 %v276
    %v623 = vunpack.c.h.b16 %v276
    %v624 = vunpack.c.l.b16 %v277
    %v625 = vunpack.c.h.b16 %v277
    %v626 = vunpack.c.l.b16 %v278
    %v627 = vunpack.c.h.b16 %v278
    %v628 = vunpack.c.l.b16 %v279
    %v629 = vunpack.c.h.b16 %v279
    %v630 = vunpack.c.l.b16 %v280
    %v631 = vunpack.c.h.b16 %v280
    %v632 = vunpack.c.l.b16 %v281
    %v633 = vunpack.c.h.b16 %v281
    %v634 = vunpack.c.l.b16 %v282
    %v635 = vunpack.c.h.b16 %v282
    %v636 = vunpack.c.l.b16 %v283
    %v637 = vunpack.c.h.b16 %v283
    %v638 = vunpack.c.l.b16 %v284
    %v639 = vunpack.c.h.b16 %v284
    %v640 = vunpack.c.l.b16 %v285
    %v641 = vunpack.c.h.b16 %v285
    %v642 = vunpack.c.l.b16 %v286
    %v643 = vunpack.c.h.b16 %v286
    %v644 = vunpack.c.l.b16 %v287
    %v645 = vunpack.c.h.b16 %v287
    %v646 = vunpack.c.l.b16 %v288
    %v647 = vunpack.c.h.b16 %v288
    %v648 = vunpack.c.l.b16 %v289
    %v649 = vunpack.c.h.b16 %v289
    %v650 = vunpack.c.l.b16 %v290
    %v651 = vunpack.c.h.b16 %v290
    %v652 = vunpack.c.l.b16 %v291
    %v653 = vunpack.c.h.b16 %v291
    %v654 = vunpack.c.l.b16 %v292
    %v655 = vunpack.c.h.b16 %v292
    %v656 = vunpack.c.l.b16 %v293
    %v657 = vunpack.c.h.b16 %v293
    %v658 = vunpack.c.l.b16 %v294
    %v659 = vunpack.c.h.b16 %v294
    %v660 = vunpack.c.l.b16 %v295
    %v661 = vunpack.c.h.b16 %v295
    %v662 = vunpack.c.l.b16 %v296
    %v663 = vunpack.c.h.b16 %v296
    %v664 = vunpack.c.l.b16 %v297
    %v665 = vunpack.c.h.b16 %v297
    %v666 = vunpack.c.l.b16 %v298
    %v667 = vunpack.c.h.b16 %v298
    %v668 = vunpack.c.l.b16 %v299
    %v669 = vunpack.c.h.b16 %v299
    %v670 = vunpack.c.l.b16 %v300
    %v671 = vunpack.c.h.b16 %v300
    %v672 = vunpack.c.l.b16 %v301
    %v673 = vunpack.c.h.b16 %v301
    %v674 = vunpack.c.l.b16 %v302
    %v675 = vunpack.c.h.b16 %v302
    %v676 = vunpack.c.l.b16 %v303
    %v677 = vunpack.c.h.b16 %v303
    %v678 = vunpack.c.l.b16 %v304
    %v679 = vunpack.c.h.b16 %v304
    %v680 = vunpack.c.l.b16 %v305
    %v681 = vunpack.c.h.b16 %v305
    %v682 = vunpack.c.l.b16 %v306
    %v683 = vunpack.c.h.b16 %v306
    %v684 = vunpack.c.l.b16 %v307
    %v685 = vunpack.c.h.b16 %v307
    %v686 = vunpack.c.l.b16 %v308
    %v687 = vunpack.c.h.b16 %v308
    %v688 = vunpack.c.l.b16 %v309
    %v689 = vunpack.c.h.b16 %v309
    %v690 = vunpack.c.l.b16 %v310
    %v691 = vunpack.c.h.b16 %v310
    %v692 = vunpack.c.l.b16 %v311
    %v693 = vunpack.c.h.b16 %v311
    %v694 = vunpack.c.l.b16 %v312
    %v695 = vunpack.c.h.b16 %v312
    %v696 = vunpack.c.l.b16 %v313
    %v697 = vunpack.c.h.b16 %v313
    %v698 = vunpack.c.l.b16 %v314
    %v699 = vunpack.c.h.b16 %v314
    %v700 = vunpack.c.l.b16 %v315
    %v701 = vunpack.c.h.b16 %v315
    %v702 = vunpack.c.l.b16 %v316
    %v703 = vunpack.c.h.b16 %v316
    %v704 = vunpack.c.l.b16 %v317
    %v705 = vunpack.c.h.b16 %v317
    %v706 = vunpack.c.l.b16 %v318
    %v707 = vunpack.c.h.b16 %v318
    %v708 = vunpack.c.l.b16 %v319
    %v709 = vunpack.c.h.b16 %v319
    %v710 = vunpack.c.l.b16 %v320
    %v711 = vunpack.c.h.b16 %v320
    %v712 = vunpack.c.l.b16 %v321
    %v713 = vunpack.c.h.b16 %v321
    %v714 = vunpack.c.l.b16 %v322
    %v715 = vunpack.c.h.b16 %v322
    %v716 = vunpack.c.l.b16 %v323
    %v717 = vunpack.c.h.b16 %v323
    %v718 = vunpack.c.l.b16 %v324
    %v719 = vunpack.c.h.b16 %v324
    %v720 = vunpack.c.l.b16 %v325
    %v721 = vunpack.c.h.b16 %v325
    %v722 = vunpack.c.l.b16 %v326
    %v723 = vunpack.c.h.b16 %v326
    %v724 = vunpack.c.l.b16 %v327
    %v725 = vunpack.c.h.b16 %v327
    %v726 = vunpack.c.l.b16 %v328
    %v727 = vunpack.c.h.b16 %v328
    %v728 = vunpack.c.l.b16 %v329
    %v729 = vunpack.c.h.b16 %v329
    %v730 = vunpack.c.l.b16 %v330
    %v731 = vunpack.c.h.b16 %v330
    %v732 = vunpack.c.l.b16 %v331
    %v733 = vunpack.c.h.b16 %v331
    %v734 = vunpack.c.l.b16 %v332
    %v735 = vunpack.c.h.b16 %v332
    %v736 = vunpack.c.l.b16 %v333
    %v737 = vunpack.c.h.b16 %v333
    %v738 = vunpack.c.l.b16 %v334
    %v739 = vunpack.c.h.b16 %v334
    %v740 = vunpack.c.l.b16 %v335
    %v741 = vunpack.c.h.b16 %v335
    %v742 = vpack.c.b16 %v490, %v486
    %v743 = vpack.c.b16 %v491, %v487
    %v744 = vpack.c.b16 %v492, %v488
    %v745 = vpack.c.b16 %v493, %v489
    %v746 = vpack.c.b16 %v498, %v494
    %v747 = vpack.c.b16 %v499, %v495
    %v748 = vpack.c.b16 %v500, %v496
    %v749 = vpack.c.b16 %v501, %v497
    %v750 = vpack.c.b16 %v506, %v502
    %v751 = vpack.c.b16 %v507, %v503
    %v752 = vpack.c.b16 %v508, %v504
    %v753 = vpack.c.b16 %v509, %v505
    %v754 = vpack.c.b16 %v514, %v510
    %v755 = vpack.c.b16 %v515, %v511
    %v756 = vpack.c.b16 %v516, %v512
    %v757 = vpack.c.b16 %v517, %v513
    %v758 = vpack.c.b16 %v522, %v518
    %v759 = vpack.c.b16 %v523, %v519
    %v760 = vpack.c.b16 %v524, %v520
    %v761 = vpack.c.b16 %v525, %v521
    %v762 = vpack.c.b16 %v530, %v526
    %v763 = vpack.c.b16 %v531, %v527
    %v764 = vpack.c.b16 %v532, %v528
    %v765 = vpack.c.b16 %v533, %v529
    %v766 = vpack.c.b16 %v538, %v534
    %v767 = vpack.c.b16 %v539, %v535
    %v768 = vpack.c.b16 %v540, %v536
    %v769 = vpack.c.b16 %v541, %v537
    %v770 = vpack.c.b16 %v546, %v542
    %v771 = vpack.c.b16 %v547, %v543
    %v772 = vpack.c.b16 %v548, %v544
    %v773 = vpack.c.b16 %v549, %v545
    %v774 = vpack.c.b16 %v554, %v550
    %v775 = vpack.c.b16 %v555, %v551
    %v776 = vpack.c.b16 %v556, %v552
    %v777 = vpack.c.b16 %v557, %v553
    %v778 = vpack.c.b16 %v562, %v558
    %v779 = vpack.c.b16 %v563, %v559
    %v780 = vpack.c.b16 %v564, %v560
    %v781 = vpack.c.b16 %v565, %v561
    %v782 = vpack.c.b16 %v570, %v566
    %v783 = vpack.c.b16 %v571, %v567
    %v784 = vpack.c.b16 %v572, %v568
    %v785 = vpack.c.b16 %v573, %v569
    %v786 = vpack.c.b16 %v578, %v574
    %v787 = vpack.c.b16 %v579, %v575
    %v788 = vpack.c.b16 %v580, %v576
    %v789 = vpack.c.b16 %v581, %v577
    %v790 = vpack.c.b16 %v586, %v582
    %v791 = vpack.c.b16 %v587, %v583
    %v792 = vpack.c.b16 %v588, %v584
    %v793 = vpack.c.b16 %v589, %v585
    %v794 = vpack.c.b16 %v594, %v590
    %v795 = vpack.c.b16 %v595, %v591
    %v796 = vpack.c.b16 %v596, %v592
    %v797 = vpack.c.b16 %v597, %v593
    %v798 = vpack.c.b16 %v602, %v598
    %v799 = vpack.c.b16 %v603, %v599
    %v800 = vpack.c.b16 %v604, %v600
    %v801 = vpack.c.b16 %v605, %v601
    %v802 = vpack.c.b16 %v610, %v606
    %v803 = vpack.c.b16 %v611, %v607
    %v804 = vpack.c.b16 %v612, %v608
    %v805 = vpack.c.b16 %v613, %v609
    %v806 = vpack.c.b16 %v618, %v614
    %v807 = vpack.c.b16 %v619, %v615
    %v808 = vpack.c.b16 %v620, %v616
    %v809 = vpack.c.b16 %v621, %v617
    %v810 = vpack.c.b16 %v626, %v622
    %v811 = vpack.c.b16 %v627, %v623
    %v812 = vpack.c.b16 %v628, %v624
    %v813 = vpack.c.b16 %v629, %v625
    %v814 = vpack.c.b16 %v634, %v630
    %v815 = vpack.c.b16 %v635, %v631
    %v816 = vpack.c.b16 %v636, %v632
    %v817 = vpack.c.b16 %v637, %v633
    %v818 = vpack.c.b16 %v642, %v638
    %v819 = vpack.c.b16 %v643, %v639
    %v820 = vpack.c.b16 %v644, %v640
    %v821 = vpack.c.b16 %v645, %v641
    %v822 = vpack.c.b16 %v650, %v646
    %v823 = vpack.c.b16 %v651, %v647
    %v824 = vpack.c.b16 %v652, %v648
    %v825 = vpack.c.b16 %v653, %v649
    %v826 = vpack.c.b16 %v658, %v654
    %v827 = vpack.c.b16 %v659, %v655
    %v828 = vpack.c.b16 %v660, %v656
    %v829 = vpack.c.b16 %v661, %v657
    %v830 = vpack.c.b16 %v666, %v662
    %v831 = vpack.c.b16 %v667, %v663
    %v832 = vpack.c.b16 %v668, %v664
    %v833 = vpack.c.b16 %v669, %v665
    %v834 = vpack.c.b16 %v674, %v670
    %v835 = vpack.c.b16 %v675, %v671
    %v836 = vpack.c.b16 %v676, %v672
    %v837 = vpack.c.b16 %v677, %v673
    %v838 = vpack.c.b16 %v682, %v678
    %v839 = vpack.c.b16 %v683, %v679
    %v840 = vpack.c.b16 %v684, %v680
    %v841 = vpack.c.b16 %v685, %v681
    %v842 = vpack.c.b16 %v690, %v686
    %v843 = vpack.c.b16 %v691, %v687
    %v844 = vpack.c.b16 %v692, %v688
    %v845 = vpack.c.b16 %v693, %v689
    %v846 = vpack.c.b16 %v698, %v694
    %v847 = vpack.c.b16 %v699, %v695
    %v848 = vpack.c.b16 %v700, %v696
    %v849 = vpack.c.b16 %v701, %v697
    %v850 = vpack.c.b16 %v706, %v702
    %v851 = vpack.c.b16 %v707, %v703
    %v852 = vpack.c.b16 %v708, %v704
    %v853 = vpack.c.b16 %v709, %v705
    %v854 = vpack.c.b16 %v714, %v710
    %v855 = vpack.c.b16 %v715, %v711
    %v856 = vpack.c.b16 %v716, %v712
    %v857 = vpack.c.b16 %v717, %v713
    %v858 = vpack.c.b16 %v722, %v718
    %v859 = vpack.c.b16 %v723, %v719
    %v860 = vpack.c.b16 %v724, %v720
    %v861 = vpack.c.b16 %v725, %v721
    %v862 = vpack.c.b16 %v730, %v726
    %v863 = vpack.c.b16 %v731, %v727
    %v864 = vpack.c.b16 %v732, %v728
    %v865 = vpack.c.b16 %v733, %v729
    %v866 = vpack.c.b16 %v738, %v734
    %v867 = vpack.c.b16 %v739, %v735
    %v868 = vpack.c.b16 %v740, %v736
    %v869 = vpack.c.b16 %v741, %v737
    %998 = vmatprep.subr.bf16.mxu0 %v771
    %999 = vmatpush1.bf16.msra.mxu0 %v770
    %1000 = vmatprep.subr.bf16.mxu0 %v767
    %1001 = vmatpush1.bf16.msra.mxu0 %v766
    %1002 = vmatprep.subr.bf16.mxu0 %v763
    %1003 = vmatpush1.bf16.msra.mxu0 %v762
    %1004 = vmatprep.subr.bf16.mxu0 %v759
    %1005 = vmatpush1.bf16.msra.mxu0 %v758
    %1006 = vmatprep.subr.bf16.mxu0 %v755
    %1007 = vmatpush1.bf16.msra.mxu0 %v754
    %1008 = vmatprep.subr.bf16.mxu0 %v751
    %1009 = vmatpush1.bf16.msra.mxu0 %v750
    %1010 = vmatprep.subr.bf16.mxu0 %v747
    %1011 = vmatpush1.bf16.msra.mxu0 %v746
    %1012 = vmatprep.subr.bf16.mxu0 %v743
    %1013 = vmatpush1.bf16.msra.mxu0 %v742
    %1014 = vmatprep.subr.bf16.mxu0 %v803
    %1015 = vmatpush2.bf16.msra.mxu0 %v802
    %1016 = vmatprep.subr.bf16.mxu0 %v799
    %1017 = vmatpush2.bf16.msra.mxu0 %v798
    %1018 = vmatprep.subr.bf16.mxu0 %v795
    %1019 = vmatpush2.bf16.msra.mxu0 %v794
    %1020 = vmatprep.subr.bf16.mxu0 %v791
    %1021 = vmatpush2.bf16.msra.mxu0 %v790
    %1022 = vmatprep.subr.bf16.mxu0 %v787
    %1023 = vmatpush2.bf16.msra.mxu0 %v786
    %1024 = vmatprep.subr.bf16.mxu0 %v783
    %1025 = vmatpush2.bf16.msra.mxu0 %v782
    %1026 = vmatprep.subr.bf16.mxu0 %v779
    %1027 = vmatpush2.bf16.msra.mxu0 %v778
    %1028 = vmatprep.subr.bf16.mxu0 %v775
    %1029 = vmatpush2.bf16.msra.mxu0 %v774
    %1030 = vmatprep.mubr.bf16.mxu0 %v205
    %1031 = vmatmul.mubr.bf16.gmra.mxu0 %v204
    %v1032 = vpop.f32.mrf.mxu0
    %v1033 = vadd.f32 %v341, %v1032
    %v1034 = vpop.f32.mrf.mxu0
    %v1035 = vadd.f32 %v345, %v1034
    %v1036 = vpop.f32.mrf.mxu0
    %v1037 = vpop.f32.mrf.mxu0
    %1038 = vdwg.mxu0
    %1039 = vmatprep.subr.bf16.mxu0 %v835
    %1040 = vmatpush1.bf16.msra.mxu0 %v834
    %1041 = vmatprep.subr.bf16.mxu0 %v831
    %1042 = vmatpush1.bf16.msra.mxu0 %v830
    %1043 = vmatprep.subr.bf16.mxu0 %v827
    %1044 = vmatpush1.bf16.msra.mxu0 %v826
    %1045 = vmatprep.subr.bf16.mxu0 %v823
    %1046 = vmatpush1.bf16.msra.mxu0 %v822
    %1047 = vmatprep.subr.bf16.mxu0 %v819
    %1048 = vmatpush1.bf16.msra.mxu0 %v818
    %1049 = vmatprep.subr.bf16.mxu0 %v815
    %1050 = vmatpush1.bf16.msra.mxu0 %v814
    %1051 = vmatprep.subr.bf16.mxu0 %v811
    %1052 = vmatpush1.bf16.msra.mxu0 %v810
    %1053 = vmatprep.subr.bf16.mxu0 %v807
    %1054 = vmatpush1.bf16.msra.mxu0 %v806
    %1055 = vmatprep.subr.bf16.mxu0 %v867
    %1056 = vmatpush2.bf16.msra.mxu0 %v866
    %1057 = vmatprep.subr.bf16.mxu0 %v863
    %1058 = vmatpush2.bf16.msra.mxu0 %v862
    %1059 = vmatprep.subr.bf16.mxu0 %v859
    %1060 = vmatpush2.bf16.msra.mxu0 %v858
    %1061 = vmatprep.subr.bf16.mxu0 %v855
    %1062 = vmatpush2.bf16.msra.mxu0 %v854
    %1063 = vmatprep.subr.bf16.mxu0 %v851
    %1064 = vmatpush2.bf16.msra.mxu0 %v850
    %1065 = vmatprep.subr.bf16.mxu0 %v847
    %1066 = vmatpush2.bf16.msra.mxu0 %v846
    %1067 = vmatprep.subr.bf16.mxu0 %v843
    %1068 = vmatpush2.bf16.msra.mxu0 %v842
    %1069 = vmatprep.subr.bf16.mxu0 %v839
    %1070 = vmatpush2.bf16.msra.mxu0 %v838
    %1071 = vmatprep.mubr.bf16.mxu0 %v207
    %1072 = vmatmul.mubr.bf16.gmra.mxu0 %v206
    %v1073 = vpop.f32.mrf.mxu0
    %v1074 = vadd.f32 %v1033, %v1073
    %v1075 = vpop.f32.mrf.mxu0
    %v1076 = vadd.f32 %v1035, %v1075
    %v1077 = vpop.f32.mrf.mxu0
    %v1078 = vpop.f32.mrf.mxu0
    %1079 = vdwg.mxu0
    %1080 = vmatprep.subr.bf16.mxu0 %v773
    %1081 = vmatpush1.bf16.msra.mxu0 %v772
    %1082 = vmatprep.subr.bf16.mxu0 %v769
    %1083 = vmatpush1.bf16.msra.mxu0 %v768
    %1084 = vmatprep.subr.bf16.mxu0 %v765
    %1085 = vmatpush1.bf16.msra.mxu0 %v764
    %1086 = vmatprep.subr.bf16.mxu0 %v761
    %1087 = vmatpush1.bf16.msra.mxu0 %v760
    %1088 = vmatprep.subr.bf16.mxu0 %v757
    %1089 = vmatpush1.bf16.msra.mxu0 %v756
    %1090 = vmatprep.subr.bf16.mxu0 %v753
    %1091 = vmatpush1.bf16.msra.mxu0 %v752
    %1092 = vmatprep.subr.bf16.mxu0 %v749
    %1093 = vmatpush1.bf16.msra.mxu0 %v748
    %1094 = vmatprep.subr.bf16.mxu0 %v745
    %1095 = vmatpush1.bf16.msra.mxu0 %v744
    %1096 = vmatprep.subr.bf16.mxu0 %v805
    %1097 = vmatpush2.bf16.msra.mxu0 %v804
    %1098 = vmatprep.subr.bf16.mxu0 %v801
    %1099 = vmatpush2.bf16.msra.mxu0 %v800
    %1100 = vmatprep.subr.bf16.mxu0 %v797
    %1101 = vmatpush2.bf16.msra.mxu0 %v796
    %1102 = vmatprep.subr.bf16.mxu0 %v793
    %1103 = vmatpush2.bf16.msra.mxu0 %v792
    %1104 = vmatprep.subr.bf16.mxu0 %v789
    %1105 = vmatpush2.bf16.msra.mxu0 %v788
    %1106 = vmatprep.subr.bf16.mxu0 %v785
    %1107 = vmatpush2.bf16.msra.mxu0 %v784
    %1108 = vmatprep.subr.bf16.mxu0 %v781
    %1109 = vmatpush2.bf16.msra.mxu0 %v780
    %1110 = vmatprep.subr.bf16.mxu0 %v777
    %1111 = vmatpush2.bf16.msra.mxu0 %v776
    %1112 = vmatprep.mubr.bf16.mxu0 %v205
    %1113 = vmatmul.mubr.bf16.gmra.mxu0 %v204
    %v1114 = vpop.f32.mrf.mxu0
    %v1115 = vadd.f32 %v349, %v1114
    %v1116 = vpop.f32.mrf.mxu0
    %v1117 = vadd.f32 %v353, %v1116
    %v1118 = vpop.f32.mrf.mxu0
    %v1119 = vpop.f32.mrf.mxu0
    %1120 = vdwg.mxu0
    %1121 = vmatprep.subr.bf16.mxu0 %v837
    %1122 = vmatpush1.bf16.msra.mxu0 %v836
    %1123 = vmatprep.subr.bf16.mxu0 %v833
    %1124 = vmatpush1.bf16.msra.mxu0 %v832
    %1125 = vmatprep.subr.bf16.mxu0 %v829
    %1126 = vmatpush1.bf16.msra.mxu0 %v828
    %1127 = vmatprep.subr.bf16.mxu0 %v825
    %1128 = vmatpush1.bf16.msra.mxu0 %v824
    %1129 = vmatprep.subr.bf16.mxu0 %v821
    %1130 = vmatpush1.bf16.msra.mxu0 %v820
    %1131 = vmatprep.subr.bf16.mxu0 %v817
    %1132 = vmatpush1.bf16.msra.mxu0 %v816
    %1133 = vmatprep.subr.bf16.mxu0 %v813
    %1134 = vmatpush1.bf16.msra.mxu0 %v812
    %1135 = vmatprep.subr.bf16.mxu0 %v809
    %1136 = vmatpush1.bf16.msra.mxu0 %v808
    %1137 = vmatprep.subr.bf16.mxu0 %v869
    %1138 = vmatpush2.bf16.msra.mxu0 %v868
    %1139 = vmatprep.subr.bf16.mxu0 %v865
    %1140 = vmatpush2.bf16.msra.mxu0 %v864
    %1141 = vmatprep.subr.bf16.mxu0 %v861
    %1142 = vmatpush2.bf16.msra.mxu0 %v860
    %1143 = vmatprep.subr.bf16.mxu0 %v857
    %1144 = vmatpush2.bf16.msra.mxu0 %v856
    %1145 = vmatprep.subr.bf16.mxu0 %v853
    %1146 = vmatpush2.bf16.msra.mxu0 %v852
    %1147 = vmatprep.subr.bf16.mxu0 %v849
    %1148 = vmatpush2.bf16.msra.mxu0 %v848
    %1149 = vmatprep.subr.bf16.mxu0 %v845
    %1150 = vmatpush2.bf16.msra.mxu0 %v844
    %1151 = vmatprep.subr.bf16.mxu0 %v841
    %1152 = vmatpush2.bf16.msra.mxu0 %v840
    %1153 = vmatprep.mubr.bf16.mxu0 %v207
    %1154 = vmatmul.mubr.bf16.gmra.mxu0 %v206
    %v1155 = vpop.f32.mrf.mxu0
    %v1156 = vadd.f32 %v1115, %v1155
    %v1157 = vpop.f32.mrf.mxu0
    %v1158 = vadd.f32 %v1117, %v1157
    %v1159 = vpop.f32.mrf.mxu0
    %v1160 = vpop.f32.mrf.mxu0
    %1161 = vdwg.mxu0
    %v1162 = vmax.f32 %v1074, 0.0
    %v1163 = vmax.f32 %v1076, 0.0
    %v1164 = vmax.f32 %v1156, 0.0
    %v1165 = vmax.f32 %v1158, 0.0
    %v1166 = vpack.c.bf16 %v1162, %v1162
    %v1167 = vpack.c.bf16 %v1163, %v1163
    %v1168 = vpack.c.bf16 %v1164, %v1164
    %v1169 = vpack.c.bf16 %v1165, %v1165
    %v1170 = vld [vmem:[%s5] sm:$0xf]
    %v1171 = vld [vmem:[%s5 + $0x4] sm:$0xf]
    %v1172 = vld [vmem:[%s5 + $0x8] sm:$0xf]
    %v1173 = vld [vmem:[%s5 + $0xc] sm:$0xf]
    %v1174 = vld [vmem:[%s5 + $0x10] sm:$0xf]
    %v1175 = vld [vmem:[%s5 + $0x14] sm:$0xf]
    %v1176 = vld [vmem:[%s5 + $0x18] sm:$0xf]
    %v1177 = vld [vmem:[%s5 + $0x1c] sm:$0xf]
    %v1178 = vld [vmem:[%s5 + $0x20] sm:$0xf]
    %v1179 = vld [vmem:[%s5 + $0x24] sm:$0xf]
    %v1180 = vld [vmem:[%s5 + $0x28] sm:$0xf]
    %v1181 = vld [vmem:[%s5 + $0x2c] sm:$0xf]
    %v1182 = vld [vmem:[%s5 + $0x30] sm:$0xf]
    %v1183 = vld [vmem:[%s5 + $0x34] sm:$0xf]
    %v1184 = vld [vmem:[%s5 + $0x38] sm:$0xf]
    %v1185 = vld [vmem:[%s5 + $0x3c] sm:$0xf]
    %v1186 = vld [vmem:[%s5 + $0x40] sm:$0xf]
    %v1187 = vld [vmem:[%s5 + $0x44] sm:$0xf]
    %v1188 = vld [vmem:[%s5 + $0x48] sm:$0xf]
    %v1189 = vld [vmem:[%s5 + $0x4c] sm:$0xf]
    %v1190 = vld [vmem:[%s5 + $0x50] sm:$0xf]
    %v1191 = vld [vmem:[%s5 + $0x54] sm:$0xf]
    %v1192 = vld [vmem:[%s5 + $0x58] sm:$0xf]
    %v1193 = vld [vmem:[%s5 + $0x5c] sm:$0xf]
    %v1194 = vld [vmem:[%s5 + $0x60] sm:$0xf]
    %v1195 = vld [vmem:[%s5 + $0x64] sm:$0xf]
    %v1196 = vld [vmem:[%s5 + $0x68] sm:$0xf]
    %v1197 = vld [vmem:[%s5 + $0x6c] sm:$0xf]
    %v1198 = vld [vmem:[%s5 + $0x70] sm:$0xf]
    %v1199 = vld [vmem:[%s5 + $0x74] sm:$0xf]
    %v1200 = vld [vmem:[%s5 + $0x78] sm:$0xf]
    %v1201 = vld [vmem:[%s5 + $0x7c] sm:$0xf]
    %v1202 = vld [vmem:[%s5 + $0x80] sm:$0xf]
    %v1203 = vld [vmem:[%s5 + $0x84] sm:$0xf]
    %v1204 = vld [vmem:[%s5 + $0x88] sm:$0xf]
    %v1205 = vld [vmem:[%s5 + $0x8c] sm:$0xf]
    %v1206 = vld [vmem:[%s5 + $0x90] sm:$0xf]
    %v1207 = vld [vmem:[%s5 + $0x94] sm:$0xf]
    %v1208 = vld [vmem:[%s5 + $0x98] sm:$0xf]
    %v1209 = vld [vmem:[%s5 + $0x9c] sm:$0xf]
    %v1210 = vld [vmem:[%s5 + $0xa0] sm:$0xf]
    %v1211 = vld [vmem:[%s5 + $0xa4] sm:$0xf]
    %v1212 = vld [vmem:[%s5 + $0xa8] sm:$0xf]
    %v1213 = vld [vmem:[%s5 + $0xac] sm:$0xf]
    %v1214 = vld [vmem:[%s5 + $0xb0] sm:$0xf]
    %v1215 = vld [vmem:[%s5 + $0xb4] sm:$0xf]
    %v1216 = vld [vmem:[%s5 + $0xb8] sm:$0xf]
    %v1217 = vld [vmem:[%s5 + $0xbc] sm:$0xf]
    %v1218 = vld [vmem:[%s5 + $0xc0] sm:$0xf]
    %v1219 = vld [vmem:[%s5 + $0xc4] sm:$0xf]
    %v1220 = vld [vmem:[%s5 + $0xc8] sm:$0xf]
    %v1221 = vld [vmem:[%s5 + $0xcc] sm:$0xf]
    %v1222 = vld [vmem:[%s5 + $0xd0] sm:$0xf]
    %v1223 = vld [vmem:[%s5 + $0xd4] sm:$0xf]
    %v1224 = vld [vmem:[%s5 + $0xd8] sm:$0xf]
    %v1225 = vld [vmem:[%s5 + $0xdc] sm:$0xf]
    %v1226 = vld [vmem:[%s5 + $0xe0] sm:$0xf]
    %v1227 = vld [vmem:[%s5 + $0xe4] sm:$0xf]
    %v1228 = vld [vmem:[%s5 + $0xe8] sm:$0xf]
    %v1229 = vld [vmem:[%s5 + $0xec] sm:$0xf]
    %v1230 = vld [vmem:[%s5 + $0xf0] sm:$0xf]
    %v1231 = vld [vmem:[%s5 + $0xf4] sm:$0xf]
    %v1232 = vld [vmem:[%s5 + $0xf8] sm:$0xf]
    %v1233 = vld [vmem:[%s5 + $0xfc] sm:$0xf]
    %v1234 = vld [vmem:[%s6] sm:$0x1]
    %v1236 = vlaneseq
    %v1237 = vshrl.u32 %v1236, 7
    %v1238 = vsub.s32 0, %v1237
    %v1239 = vrot.slane %v1234, %v1238
    %v1305 = vunpack.c.l.b16 %v1170
    %v1306 = vunpack.c.l.b16 %v1171
    %v1307 = vunpack.c.l.b16 %v1172
    %v1308 = vunpack.c.l.b16 %v1173
    %v1309 = vunpack.c.l.b16 %v1174
    %v1310 = vunpack.c.l.b16 %v1175
    %v1311 = vunpack.c.l.b16 %v1176
    %v1312 = vunpack.c.l.b16 %v1177
    %v1313 = vunpack.c.l.b16 %v1178
    %v1314 = vunpack.c.l.b16 %v1179
    %v1315 = vunpack.c.l.b16 %v1180
    %v1316 = vunpack.c.l.b16 %v1181
    %v1317 = vunpack.c.l.b16 %v1182
    %v1318 = vunpack.c.l.b16 %v1183
    %v1319 = vunpack.c.l.b16 %v1184
    %v1320 = vunpack.c.l.b16 %v1185
    %v1321 = vunpack.c.l.b16 %v1186
    %v1322 = vunpack.c.l.b16 %v1187
    %v1323 = vunpack.c.l.b16 %v1188
    %v1324 = vunpack.c.l.b16 %v1189
    %v1325 = vunpack.c.l.b16 %v1190
    %v1326 = vunpack.c.l.b16 %v1191
    %v1327 = vunpack.c.l.b16 %v1192
    %v1328 = vunpack.c.l.b16 %v1193
    %v1329 = vunpack.c.l.b16 %v1194
    %v1330 = vunpack.c.l.b16 %v1195
    %v1331 = vunpack.c.l.b16 %v1196
    %v1332 = vunpack.c.l.b16 %v1197
    %v1333 = vunpack.c.l.b16 %v1198
    %v1334 = vunpack.c.l.b16 %v1199
    %v1335 = vunpack.c.l.b16 %v1200
    %v1336 = vunpack.c.l.b16 %v1201
    %v1337 = vunpack.c.l.b16 %v1202
    %v1338 = vunpack.c.l.b16 %v1203
    %v1339 = vunpack.c.l.b16 %v1204
    %v1340 = vunpack.c.l.b16 %v1205
    %v1341 = vunpack.c.l.b16 %v1206
    %v1342 = vunpack.c.l.b16 %v1207
    %v1343 = vunpack.c.l.b16 %v1208
    %v1344 = vunpack.c.l.b16 %v1209
    %v1345 = vunpack.c.l.b16 %v1210
    %v1346 = vunpack.c.l.b16 %v1211
    %v1347 = vunpack.c.l.b16 %v1212
    %v1348 = vunpack.c.l.b16 %v1213
    %v1349 = vunpack.c.l.b16 %v1214
    %v1350 = vunpack.c.l.b16 %v1215
    %v1351 = vunpack.c.l.b16 %v1216
    %v1352 = vunpack.c.l.b16 %v1217
    %v1353 = vunpack.c.l.b16 %v1218
    %v1354 = vunpack.c.l.b16 %v1219
    %v1355 = vunpack.c.l.b16 %v1220
    %v1356 = vunpack.c.l.b16 %v1221
    %v1357 = vunpack.c.l.b16 %v1222
    %v1358 = vunpack.c.l.b16 %v1223
    %v1359 = vunpack.c.l.b16 %v1224
    %v1360 = vunpack.c.l.b16 %v1225
    %v1361 = vunpack.c.l.b16 %v1226
    %v1362 = vunpack.c.l.b16 %v1227
    %v1363 = vunpack.c.l.b16 %v1228
    %v1364 = vunpack.c.l.b16 %v1229
    %v1365 = vunpack.c.l.b16 %v1230
    %v1366 = vunpack.c.l.b16 %v1231
    %v1367 = vunpack.c.l.b16 %v1232
    %v1368 = vunpack.c.l.b16 %v1233
    %v1369 = vpack.c.b16 %v1306, %v1305
    %v1370 = vpack.c.b16 %v1308, %v1307
    %v1371 = vpack.c.b16 %v1310, %v1309
    %v1372 = vpack.c.b16 %v1312, %v1311
    %v1373 = vpack.c.b16 %v1314, %v1313
    %v1374 = vpack.c.b16 %v1316, %v1315
    %v1375 = vpack.c.b16 %v1318, %v1317
    %v1376 = vpack.c.b16 %v1320, %v1319
    %v1377 = vpack.c.b16 %v1322, %v1321
    %v1378 = vpack.c.b16 %v1324, %v1323
    %v1379 = vpack.c.b16 %v1326, %v1325
    %v1380 = vpack.c.b16 %v1328, %v1327
    %v1381 = vpack.c.b16 %v1330, %v1329
    %v1382 = vpack.c.b16 %v1332, %v1331
    %v1383 = vpack.c.b16 %v1334, %v1333
    %v1384 = vpack.c.b16 %v1336, %v1335
    %v1385 = vpack.c.b16 %v1338, %v1337
    %v1386 = vpack.c.b16 %v1340, %v1339
    %v1387 = vpack.c.b16 %v1342, %v1341
    %v1388 = vpack.c.b16 %v1344, %v1343
    %v1389 = vpack.c.b16 %v1346, %v1345
    %v1390 = vpack.c.b16 %v1348, %v1347
    %v1391 = vpack.c.b16 %v1350, %v1349
    %v1392 = vpack.c.b16 %v1352, %v1351
    %v1393 = vpack.c.b16 %v1354, %v1353
    %v1394 = vpack.c.b16 %v1356, %v1355
    %v1395 = vpack.c.b16 %v1358, %v1357
    %v1396 = vpack.c.b16 %v1360, %v1359
    %v1397 = vpack.c.b16 %v1362, %v1361
    %v1398 = vpack.c.b16 %v1364, %v1363
    %v1399 = vpack.c.b16 %v1366, %v1365
    %v1400 = vpack.c.b16 %v1368, %v1367
    %1433 = vmatprep.subr.bf16.mxu0 0
    %1434 = vmatpush1.bf16.msra.mxu0 %v1376
    %1435 = vmatprep.subr.bf16.mxu0 0
    %1436 = vmatpush1.bf16.msra.mxu0 %v1375
    %1437 = vmatprep.subr.bf16.mxu0 0
    %1438 = vmatpush1.bf16.msra.mxu0 %v1374
    %1439 = vmatprep.subr.bf16.mxu0 0
    %1440 = vmatpush1.bf16.msra.mxu0 %v1373
    %1441 = vmatprep.subr.bf16.mxu0 0
    %1442 = vmatpush1.bf16.msra.mxu0 %v1372
    %1443 = vmatprep.subr.bf16.mxu0 0
    %1444 = vmatpush1.bf16.msra.mxu0 %v1371
    %1445 = vmatprep.subr.bf16.mxu0 0
    %1446 = vmatpush1.bf16.msra.mxu0 %v1370
    %1447 = vmatprep.subr.bf16.mxu0 0
    %1448 = vmatpush1.bf16.msra.mxu0 %v1369
    %1449 = vmatprep.subr.bf16.mxu0 0
    %1450 = vmatpush2.bf16.msra.mxu0 %v1384
    %1451 = vmatprep.subr.bf16.mxu0 0
    %1452 = vmatpush2.bf16.msra.mxu0 %v1383
    %1453 = vmatprep.subr.bf16.mxu0 0
    %1454 = vmatpush2.bf16.msra.mxu0 %v1382
    %1455 = vmatprep.subr.bf16.mxu0 0
    %1456 = vmatpush2.bf16.msra.mxu0 %v1381
    %1457 = vmatprep.subr.bf16.mxu0 0
    %1458 = vmatpush2.bf16.msra.mxu0 %v1380
    %1459 = vmatprep.subr.bf16.mxu0 0
    %1460 = vmatpush2.bf16.msra.mxu0 %v1379
    %1461 = vmatprep.subr.bf16.mxu0 0
    %1462 = vmatpush2.bf16.msra.mxu0 %v1378
    %1463 = vmatprep.subr.bf16.mxu0 0
    %1464 = vmatpush2.bf16.msra.mxu0 %v1377
    %1465 = vmatprep.mubr.bf16.mxu0 %v1167
    %1466 = vmatmul.mubr.bf16.gmra.mxu0 %v1166
    %v1467 = vpop.f32.mrf.mxu0
    %v1468 = vadd.f32 %v1239, %v1467
    %v1469 = vpop.f32.mrf.mxu0
    %v1470 = vpop.f32.mrf.mxu0
    %v1471 = vpop.f32.mrf.mxu0
    %1472 = vdwg.mxu0
    %1473 = vmatprep.subr.bf16.mxu0 0
    %1474 = vmatpush1.bf16.msra.mxu0 %v1392
    %1475 = vmatprep.subr.bf16.mxu0 0
    %1476 = vmatpush1.bf16.msra.mxu0 %v1391
    %1477 = vmatprep.subr.bf16.mxu0 0
    %1478 = vmatpush1.bf16.msra.mxu0 %v1390
    %1479 = vmatprep.subr.bf16.mxu0 0
    %1480 = vmatpush1.bf16.msra.mxu0 %v1389
    %1481 = vmatprep.subr.bf16.mxu0 0
    %1482 = vmatpush1.bf16.msra.mxu0 %v1388
    %1483 = vmatprep.subr.bf16.mxu0 0
    %1484 = vmatpush1.bf16.msra.mxu0 %v1387
    %1485 = vmatprep.subr.bf16.mxu0 0
    %1486 = vmatpush1.bf16.msra.mxu0 %v1386
    %1487 = vmatprep.subr.bf16.mxu0 0
    %1488 = vmatpush1.bf16.msra.mxu0 %v1385
    %1489 = vmatprep.subr.bf16.mxu0 0
    %1490 = vmatpush2.bf16.msra.mxu0 %v1400
    %1491 = vmatprep.subr.bf16.mxu0 0
    %1492 = vmatpush2.bf16.msra.mxu0 %v1399
    %1493 = vmatprep.subr.bf16.mxu0 0
    %1494 = vmatpush2.bf16.msra.mxu0 %v1398
    %1495 = vmatprep.subr.bf16.mxu0 0
    %1496 = vmatpush2.bf16.msra.mxu0 %v1397
    %1497 = vmatprep.subr.bf16.mxu0 0
    %1498 = vmatpush2.bf16.msra.mxu0 %v1396
    %1499 = vmatprep.subr.bf16.mxu0 0
    %1500 = vmatpush2.bf16.msra.mxu0 %v1395
    %1501 = vmatprep.subr.bf16.mxu0 0
    %1502 = vmatpush2.bf16.msra.mxu0 %v1394
    %1503 = vmatprep.subr.bf16.mxu0 0
    %1504 = vmatpush2.bf16.msra.mxu0 %v1393
    %1505 = vmatprep.mubr.bf16.mxu0 %v1169
    %1506 = vmatmul.mubr.bf16.gmra.mxu0 %v1168
    %v1507 = vpop.f32.mrf.mxu0
    %v1508 = vadd.f32 %v1468, %v1507
    %v1509 = vpop.f32.mrf.mxu0
    %v1510 = vpop.f32.mrf.mxu0
    %v1511 = vpop.f32.mrf.mxu0
    %1512 = vdwg.mxu0
    %v1513 = vtanh.pop %v1508
    %v1514 = vmax.f32 %v1513, -0.999
    %v1515 = vmin.f32 %v1514, 0.999
    %vm1516 = vcmask 58368
    %1517 = vst.msk [vmem:[#allocation5] sm:$0x3] %vm1516, %v1515
    // Predicated region
    $region34: #{sac_actor_forward.1} parent=1 // pred_check
      _
    $region35: #{sac_actor_forward.1} parent=1 // pred_check_branch
      %1519 = sbr.rel (0) target = $region37
    $region36: #{sac_actor_forward.1} parent=1 // pred_region
      %s1521 = ssub.s32 32, 32
      %1522 = vsyncadd [#allocation4], %s1521
      %s1524 = sshll.u32 [#allocation5], 4
      %s1525 = int_to_ptr.vmem [resolvable:$true] %s1524
      %1527 = dma.vmem_to_hbm [thread:$0]  %s1525, 32, %s7, [#allocation4]
    $region37: #{sac_actor_forward.1} parent=1 // pred_fallthru
      _
    // Predicated region
    $region38: #{sac_actor_forward.1} parent=1 // pred_check
      _
    $region39: #{sac_actor_forward.1} parent=1 // pred_check_branch
      %1529 = sbr.rel (0) target = $region41
    $region40: #{sac_actor_forward.1} parent=1 // pred_region
      %1530 = dma.done [#allocation4], 32
    $region41: #{sac_actor_forward.1} parent=1 // pred_fallthru
      _
    %1531 = vsyncpa [#allocation3], 1
    %1532 = vsyncpa [#allocation4], 1

</llo_original>
